<compile_context>
chip_gen: v7x
topology: tpu7x:2x2x1
jax: 0.10.0
libtpu: 0.0.40
codegen_flags: <defaults>
</compile_context>

<pallas_src>
import functools

import jax
import jax.numpy as jnp
from jax.experimental import pallas as pl
from jax.experimental.pallas import tpu as pltpu

_MB = 1 << 20


def _round_up(a, b):
    return ((a + b - 1) // b) * b


def _vmem_capacity_bytes():
    """Physical VMEM (64 MiB on v7x, 128 MiB on v5e/v6e); conservative default."""
    try:
        return int(pltpu.get_tpu_info().vmem_capacity_bytes)
    except Exception:
        return 64 * _MB


# --------------------------------------------------------------------------- #
# Path A: fused single-pass kernel (pool + gate MLP + multiply, one HBM round) #
# --------------------------------------------------------------------------- #
def _fused_kernel(x_ref, w1_ref, w2_ref, o_ref, *, hw):
    xs = x_ref[...]                                              # (C, HW), native dtype
    xf = xs.astype(jnp.float32)
    avg = jnp.sum(xf, axis=-1, keepdims=True) * (1.0 / hw)       # (C, 1) f32
    mx = jnp.max(xf, axis=-1, keepdims=True)                     # (C, 1) f32

    w1f = w1_ref[...].astype(jnp.float32)                        # (C, C)
    w2f = w2_ref[...].astype(jnp.float32)                        # (C, C)
    # fc2(relu(fc1(avg))) + fc2(relu(fc1(max))) == fc2(relu(fc1(avg)) + relu(fc1(max)))
    h_avg = jnp.maximum(jnp.dot(w1f, avg, preferred_element_type=jnp.float32), 0.0)
    h_max = jnp.maximum(jnp.dot(w1f, mx, preferred_element_type=jnp.float32), 0.0)
    o = jnp.dot(w2f, h_avg + h_max, preferred_element_type=jnp.float32)
    gate = jax.nn.sigmoid(o)                                     # (C, 1) f32

    o_ref[...] = (xs * gate.astype(xs.dtype)).astype(o_ref.dtype)


# --------------------------------------------------------------------------- #
# Path B: streaming two-pass fallback                                          #
# --------------------------------------------------------------------------- #
def _pool_kernel(x_ref, sum_ref, max_ref, *, tile, hw):
    """Accumulate per-channel sum/max over spatial tiles, directly into outputs."""
    t = pl.program_id(1)
    xs = x_ref[...]                                              # (C, tile)

    def _partials(masked):
        if masked:
            # Last (partial) tile: OOB lanes contain garbage -> mask them.
            lane = jax.lax.broadcasted_iota(jnp.int32, xs.shape, 1)
            valid = (t * tile + lane) < hw
            s = jnp.sum(jnp.where(valid, xs, 0).astype(jnp.float32),
                        axis=-1, keepdims=True)
            m = jnp.max(jnp.where(valid, xs, -jnp.inf),
                        axis=-1, keepdims=True).astype(jnp.float32)
        else:
            s = jnp.sum(xs.astype(jnp.float32), axis=-1, keepdims=True)
            m = jnp.max(xs, axis=-1, keepdims=True).astype(jnp.float32)
        return s, m

    def _accumulate(s, m):
        @pl.when(t == 0)
        def _():
            sum_ref[...] = s
            max_ref[...] = m

        @pl.when(t > 0)
        def _():
            sum_ref[...] = sum_ref[...] + s
            max_ref[...] = jnp.maximum(max_ref[...], m)

    if hw % tile == 0:
        # No remainder: single unmasked fast path for every tile.
        _accumulate(*_partials(False))
    else:
        last = pl.num_programs(1) - 1

        @pl.when(t != last)
        def _():
            _accumulate(*_partials(False))

        @pl.when(t == last)
        def _():
            _accumulate(*_partials(True))


def _gate_mul_kernel(x_ref, g_ref, o_ref):
    """out = x * gate; gate (C,1) broadcast along lanes, x kept in native dtype."""
    g = g_ref[...].astype(x_ref.dtype)                           # (C, 1)
    o_ref[...] = (x_ref[...] * g).astype(o_ref.dtype)


# --------------------------------------------------------------------------- #
# Wrapper                                                                      #
# --------------------------------------------------------------------------- #
def channel_attention(x, w1, w2, *, force_two_pass=False, tile_override=None):
    """x: (N, C, H, W); w1, w2: (C, C) squeezed 1x1 Conv2d weights (bias=False)."""
    N, C, H, W = x.shape
    HW = H * W
    itemsize = jnp.dtype(x.dtype).itemsize
    x_flat = x.reshape(N, C, HW)                                 # contiguous, free

    vmem_cap = _vmem_capacity_bytes()
    vmem_budget = min((vmem_cap * 3) // 4, 96 * _MB)             # 48 MiB on v7x, 96 MiB on v5e/v6e

    # Fused-path VMEM need: 2x double-buffered (in + out) slabs, one f32 temp,
    # double-buffered weights, small headroom.
    slab_bytes = C * HW * itemsize
    w_bytes = 2 * C * C * jnp.dtype(w1.dtype).itemsize
    fused_need = 4 * slab_bytes + 4 * C * HW + 2 * w_bytes + 2 * _MB
    use_fused = (not force_two_pass) and fused_need <= vmem_budget

    if use_fused:
        # TODO(synk): for v7x with N == 1, add a second parallel grid axis
        # (split C or HW) so both TensorCores get work.
        out_flat = pl.pallas_call(
            functools.partial(_fused_kernel, hw=HW),
            out_shape=jax.ShapeDtypeStruct((N, C, HW), x.dtype),
            grid_spec=pltpu.PrefetchScalarGridSpec(
                num_scalar_prefetch=0,
                grid=(N,),
                in_specs=[pl.BlockSpec((pl.Squeezed(), C, HW), lambda n: (n, 0, 0)),
                          pl.BlockSpec((C, C), lambda n: (0, 0)),
                          pl.BlockSpec((C, C), lambda n: (0, 0))],
                out_specs=pl.BlockSpec((pl.Squeezed(), C, HW), lambda n: (n, 0, 0)),
            ),
            compiler_params=pltpu.CompilerParams(
                dimension_semantics=("parallel",),
                vmem_limit_bytes=int(vmem_budget),
            ),
        )(x_flat, w1, w2)
        return out_flat.reshape(N, C, H, W)

    # ---------------- streaming two-pass fallback ---------------------------
    # Lane tile: multiple of 128, targeting ~4 MiB per x block (HBM-bound regime),
    # clipped to the (128-rounded) spatial extent.
    target_block = 4 * _MB
    tile = max(128, (target_block // max(1, C * itemsize)) // 128 * 128)
    tile = min(tile, _round_up(HW, 128))
    if tile_override is not None:
        tile = tile_override
    num_t = pl.cdiv(HW, tile)
    block_bytes = C * tile * itemsize
    vmem_limit = int(min(vmem_budget, max(32 * _MB, 8 * block_bytes + 4 * _MB)))

    # -- pass 1: streaming avg/max pooling, accumulating directly into outputs --
    sum_c, max_c = pl.pallas_call(
        functools.partial(_pool_kernel, tile=tile, hw=HW),
        out_shape=(jax.ShapeDtypeStruct((N, C, 1), jnp.float32),
                   jax.ShapeDtypeStruct((N, C, 1), jnp.float32)),
        grid_spec=pltpu.PrefetchScalarGridSpec(
            num_scalar_prefetch=0,
            grid=(N, num_t),
            in_specs=[pl.BlockSpec((pl.Squeezed(), C, tile), lambda n, t: (n, 0, t))],
            out_specs=[pl.BlockSpec((pl.Squeezed(), C, 1), lambda n, t: (n, 0, 0)),
                       pl.BlockSpec((pl.Squeezed(), C, 1), lambda n, t: (n, 0, 0))],
        ),
        compiler_params=pltpu.CompilerParams(
            dimension_semantics=("parallel", "arbitrary"),
            vmem_limit_bytes=vmem_limit,
        ),
    )(x_flat)

    # -- tiny gate MLP in XLA: one batched matmul chain over all avg/max stats --
    avg = sum_c[..., 0] * (1.0 / HW)                             # (N, C) f32
    mx = max_c[..., 0]                                           # (N, C) f32
    stats = jnp.concatenate([avg, mx], axis=0)                   # (2N, C)
    w1f = w1.astype(jnp.float32)
    w2f = w2.astype(jnp.float32)
    h = jnp.maximum(stats @ w1f.T, 0.0)                          # fc1 + relu
    o = h @ w2f.T                                                # fc2
    gate = jax.nn.sigmoid(o[:N] + o[N:])[..., None]              # (N, C, 1) f32

    # -- pass 2: streaming gate multiply (partial last block clipped by Pallas) --
    out_flat = pl.pallas_call(
        _gate_mul_kernel,
        out_shape=jax.ShapeDtypeStruct((N, C, HW), x.dtype),
        grid_spec=pltpu.PrefetchScalarGridSpec(
            num_scalar_prefetch=0,
            grid=(N, num_t),
            in_specs=[pl.BlockSpec((pl.Squeezed(), C, tile), lambda n, t: (n, 0, t)),
                      pl.BlockSpec((pl.Squeezed(), C, 1), lambda n, t: (n, 0, 0))],
            out_specs=pl.BlockSpec((pl.Squeezed(), C, tile), lambda n, t: (n, 0, t)),
        ),
        compiler_params=pltpu.CompilerParams(
            dimension_semantics=("parallel", "parallel"),
            vmem_limit_bytes=vmem_limit,
        ),
    )(x_flat, gate)
    return out_flat.reshape(N, C, H, W)


def channel_attention_ref(x, w1, w2):
    """Pure-JAX reference mirroring the PyTorch forward."""
    avg = jnp.mean(x, axis=(2, 3))                               # (N, C)
    mx = jnp.max(x, axis=(2, 3))                                 # (N, C)

    def mlp(v):
        v = jnp.einsum("oc,nc->no", w1, v)
        v = jnp.maximum(v, 0.0)
        v = jnp.einsum("oc,nc->no", w2, v)
        return v

    out = mlp(avg) + mlp(mx)
    return x * jax.nn.sigmoid(out)[:, :, None, None]


if __name__ == "__main__":
    key = jax.random.PRNGKey(0)

    # ---- case 1: small canonical shape -> fused single-pass path ------------
    N, C, H, W = 2, 4, 16, 16
    kx, k1, k2, kx2, k3, k4 = jax.random.split(key, 6)
    x = jax.random.normal(kx, (N, C, H, W), dtype=jnp.float32)
    # Deterministic Conv2d(C, C, 1, bias=False) weights, squeezed to (C, C).
    w1 = jax.random.normal(k1, (C, C), dtype=jnp.float32) * (1.0 / jnp.sqrt(C))
    w2 = jax.random.normal(k2, (C, C), dtype=jnp.float32) * (1.0 / jnp.sqrt(C))

    out = jax.block_until_ready(channel_attention(x, w1, w2))
    ref = channel_attention_ref(x, w1, w2)
    assert out.shape == (N, C, H, W)
    assert jnp.allclose(out, ref, atol=1e-5, rtol=1e-5), "fused path mismatch"

    # ---- case 2: ragged spatial extent, forced two-pass streaming path ------
    # (exercises multi-tile accumulation, last-tile masking and partial-block
    #  output clipping with no padding / slicing through HBM)
    N2, C2, H2, W2 = 2, 8, 17, 31
    x2 = jax.random.normal(kx2, (N2, C2, H2, W2), dtype=jnp.float32)
    w1b = jax.random.normal(k3, (C2, C2), dtype=jnp.float32) * (1.0 / jnp.sqrt(C2))
    w2b = jax.random.normal(k4, (C2, C2), dtype=jnp.float32) * (1.0 / jnp.sqrt(C2))

    out2 = jax.block_until_ready(
        channel_attention(x2, w1b, w2b, force_two_pass=True, tile_override=256))
    ref2 = channel_attention_ref(x2, w1b, w2b)
    assert out2.shape == (N2, C2, H2, W2)
    assert jnp.allclose(out2, ref2, atol=1e-5, rtol=1e-5), "two-pass path mismatch"

    print("KERNEL_OK")
</pallas_src>

<mosaic_0001>
module attributes {stable_mosaic.version = 11 : i64} {
  func.func @_fused_kernel(%arg0: i32, %arg1: memref<1x4x256xf32, #tpu.memory_space<vmem>>, %arg2: memref<4x4xf32, #tpu.memory_space<vmem>>, %arg3: memref<4x4xf32, #tpu.memory_space<vmem>>, %arg4: memref<1x4x256xf32, #tpu.memory_space<vmem>>) attributes {dimension_semantics = [#tpu.dimension_semantics<parallel>], iteration_bounds = array<i64: 2>, scalar_prefetch = 0 : i64, scratch_operands = 0 : i64, tpu.core_type = #tpu.core_type<tc>, window_params = [{transform_indices = @transform_0, window_bounds = array<i64: 1, 4, 256>}, {pipeline_mode = #tpu.pipeline_mode<synchronous>, transform_indices = @transform_1, window_bounds = array<i64: 4, 4>}, {pipeline_mode = #tpu.pipeline_mode<synchronous>, transform_indices = @transform_2, window_bounds = array<i64: 4, 4>}, {transform_indices = @transform_3, window_bounds = array<i64: 1, 4, 256>}]} {
    %c0 = arith.constant 0 : index
    %c0_0 = arith.constant 0 : index
    %c0_1 = arith.constant 0 : index
    %0 = vector.load %arg1[%c0, %c0_0, %c0_1] : memref<1x4x256xf32, #tpu.memory_space<vmem>>, vector<1x4x256xf32>
    %1 = vector.shape_cast %0 : vector<1x4x256xf32> to vector<4x256xf32>
    %cst = arith.constant dense<0.000000e+00> : vector<4xf32>
    %2 = vector.multi_reduction <add>, %1, %cst [1] : vector<4x256xf32> to vector<4xf32>
    %3 = vector.shape_cast %2 : vector<4xf32> to vector<4x1xf32>
    %cst_2 = arith.constant 3.906250e-03 : f32
    %4 = vector.broadcast %cst_2 : f32 to vector<4x1xf32>
    %5 = arith.mulf %3, %4 : vector<4x1xf32>
    %cst_3 = arith.constant dense<0xFF800000> : vector<4xf32>
    %6 = vector.multi_reduction <maximumf>, %1, %cst_3 [1] : vector<4x256xf32> to vector<4xf32>
    %7 = vector.shape_cast %6 : vector<4xf32> to vector<4x1xf32>
    %c0_4 = arith.constant 0 : index
    %c0_5 = arith.constant 0 : index
    %8 = vector.load %arg2[%c0_4, %c0_5] : memref<4x4xf32, #tpu.memory_space<vmem>>, vector<4x4xf32>
    %c0_6 = arith.constant 0 : index
    %c0_7 = arith.constant 0 : index
    %9 = vector.load %arg3[%c0_6, %c0_7] : memref<4x4xf32, #tpu.memory_space<vmem>>, vector<4x4xf32>
    %cst_8 = arith.constant dense<0.000000e+00> : vector<4x1xf32>
    %10 = tpu.matmul %8, %5, %cst_8 {dimension_numbers = #tpu.dot_dimension_numbers<[1], [0], [0], [1], [0, 0, 1, 1], [], []>} : vector<4x4xf32>, vector<4x1xf32>, vector<4x1xf32> -> vector<4x1xf32>
    %cst_9 = arith.constant 0.000000e+00 : f32
    %11 = vector.broadcast %cst_9 : f32 to vector<4x1xf32>
    %12 = arith.maximumf %10, %11 : vector<4x1xf32>
    %cst_10 = arith.constant dense<0.000000e+00> : vector<4x1xf32>
    %13 = tpu.matmul %8, %7, %cst_10 {dimension_numbers = #tpu.dot_dimension_numbers<[1], [0], [0], [1], [0, 0, 1, 1], [], []>} : vector<4x4xf32>, vector<4x1xf32>, vector<4x1xf32> -> vector<4x1xf32>
    %cst_11 = arith.constant 0.000000e+00 : f32
    %14 = vector.broadcast %cst_11 : f32 to vector<4x1xf32>
    %15 = arith.maximumf %13, %14 : vector<4x1xf32>
    %16 = arith.addf %12, %15 : vector<4x1xf32>
    %cst_12 = arith.constant dense<0.000000e+00> : vector<4x1xf32>
    %17 = tpu.matmul %9, %16, %cst_12 {dimension_numbers = #tpu.dot_dimension_numbers<[1], [0], [0], [1], [0, 0, 1, 1], [], []>} : vector<4x4xf32>, vector<4x1xf32>, vector<4x1xf32> -> vector<4x1xf32>
    %18 = arith.negf %17 : vector<4x1xf32>
    %19 = math.exp %18 : vector<4x1xf32>
    %cst_13 = arith.constant 1.000000e+00 : f32
    %20 = vector.broadcast %cst_13 : f32 to vector<4x1xf32>
    %21 = arith.addf %20, %19 : vector<4x1xf32>
    %22 = arith.divf %20, %21 : vector<4x1xf32>
    %23 = vector.broadcast %22 : vector<4x1xf32> to vector<4x256xf32>
    %24 = arith.mulf %1, %23 : vector<4x256xf32>
    %c0_14 = arith.constant 0 : index
    %c0_15 = arith.constant 0 : index
    %c0_16 = arith.constant 0 : index
    %25 = vector.load %arg4[%c0_14, %c0_15, %c0_16] : memref<1x4x256xf32, #tpu.memory_space<vmem>>, vector<1x4x256xf32>
    %26 = vector.shape_cast %25 : vector<1x4x256xf32> to vector<4x256xf32>
    %27 = vector.shape_cast %24 : vector<4x256xf32> to vector<1x4x256xf32>
    tpu.vector_store %arg4[%c0_14, %c0_15, %c0_16], %27 {strides = array<i32>} : memref<1x4x256xf32, #tpu.memory_space<vmem>>, vector<1x4x256xf32>,
    return
  }
  func.func @transform_0(%arg0: i32) -> (i32, i32, i32) {
    %c0_i32 = arith.constant 0 : i32
    %c0_i32_0 = arith.constant 0 : i32
    %c0_i32_1 = arith.constant 0 : i32
    return %arg0, %c0_i32, %c0_i32_0 : i32, i32, i32
  }
  func.func @transform_1(%arg0: i32) -> (i32, i32) {
    %c0_i32 = arith.constant 0 : i32
    %c0_i32_0 = arith.constant 0 : i32
    %c0_i32_1 = arith.constant 0 : i32
    return %c0_i32, %c0_i32_0 : i32, i32
  }
  func.func @transform_2(%arg0: i32) -> (i32, i32) {
    %c0_i32 = arith.constant 0 : i32
    %c0_i32_0 = arith.constant 0 : i32
    %c0_i32_1 = arith.constant 0 : i32
    return %c0_i32, %c0_i32_0 : i32, i32
  }
  func.func @transform_3(%arg0: i32) -> (i32, i32, i32) {
    %c0_i32 = arith.constant 0 : i32
    %c0_i32_0 = arith.constant 0 : i32
    %c0_i32_1 = arith.constant 0 : i32
    return %arg0, %c0_i32, %c0_i32_0 : i32, i32, i32
  }
}

</mosaic_0001>

<llo_original>
// kernel: tpu_custom_call.1
$region0: #{tpu_custom_call.1}
  #allocation0 [shape = 'u32[]', space=smem, size = 0x4, offset = 0x4, fixed_abs, tag = 'smem constant byte address 0x4 - core index']
  #allocation1 [shape = 'u32[144,128]{1,0:T(1,128)}', space=vmem, size = 0x12000, scoped, tag = 'internal scratch']
  %s0 = inlined_call_operand.hbm [shape: f32[2,4,256], index: 0, kind: input, shape index: {}]
  %s1 = inlined_call_operand.hbm [shape: f32[4,4], index: 1, kind: input, shape index: {}]
  %s2 = inlined_call_operand.vmem [shape: f32[4,4], index: 2, kind: input, shape index: {}]
  %s3 = inlined_call_operand.hbm [shape: f32[2,4,256], index: 3, kind: output, shape index: {}]
  %s4 = sld [smem:[#allocation0]]
  $region53: #{tpu_custom_call.1} parent=0
    _
  %s6 = ssub.s32 1, %s4
  %s7 = scalar_select 0, %s6, %s4
  $region1: #{tpu_custom_call.1} parent=0
    #allocation2 [shape = 'u8[8192]{0}', space=vmem, size = 0x2000, scoped, tag = 'input window, operand 0']
    #allocation3 [shape = 's32[2]{0}', space=sflag, size = 0x8, scoped, tag = 'scoped memory for tpu_custom_call.1']
    #allocation4 [shape = 's32[2]{0}', space=sflag, size = 0x8, scoped, tag = 'scoped memory for tpu_custom_call.1']
    #allocation5 [shape = 'u8[2048]{0}', space=vmem, size = 0x800, scoped, tag = 'input window, operand 1, single buffered']
    #allocation6 [shape = 's32[1]{0}', space=sflag, size = 0x4, scoped, tag = 'scoped memory for tpu_custom_call.1']
    #allocation7 [shape = 'u8[8192]{0}', space=vmem, size = 0x2000, scoped, tag = 'output window, operand 0']
    %8 = vsyncpa [#allocation3], 0
    %s9 = scalar_lea.sflag [#allocation3], 1
    %10 = vsyncpa %s9, 0
    %11 = vsyncpa [#allocation6], 0
    %12 = vsyncpa [#allocation4], 0
    %s13 = scalar_lea.sflag [#allocation4], 1
    %14 = vsyncpa %s13, 0
    loop: start=0, step=1, limit=4
    $region2: #{tpu_custom_call.1} parent=1 // loop_pre_header
      _
    $region3: #{tpu_custom_call.1} parent=1 // loop_header
      %s16 = sphi 0, %s20
      %p17 = scmp.ge.s32.totalorder %s16, 4
      %s26 = sphi 0, %s28
      %s29 = sphi 0, %s26
      %s30 = sphi 0, %s29
      %s46 = sphi 0, %s30
      %s50 = sphi 0, %s50
      %s52 = sphi 0, %s50
      %s53 = sphi 0, %s52
      %s67 = sphi 0, %s53
      %s71 = sphi 0, %s71
      %s73 = sphi 0, %s71
      %s74 = sphi 0, %s73
      %s88 = sphi 0, %s74
      %s94 = sphi 0, %s96
      %s97 = sphi 0, %s94
      %s98 = sphi 0, %s97
      %s114 = sphi 0, %s98
    $region4: #{tpu_custom_call.1} parent=1 // loop_header_branch
      %19 = sbr.rel (%p17) target = $region8
    $region5: #{tpu_custom_call.1} parent=1 // loop_body
      %s21 = ssub.s32 %s16, 1
      %s22 = ssub.s32 %s16, 2
      %s23 = sadd.s32 %s16, 1
      %s24 = ssub.s32 %s16, %s23
      %p25 = scmp.eq.s32.totalorder %s24, 0
      %s27 = sadd.s32 %s26, 1
      %s28 = scalar_select %p25, %s26, %s27
      %p31 = pneg %p25
      %p32 = scmp.eq.s32.totalorder %s16, 1
      %p33 = por %p31, %p32
      %p34 = scmp.ne.s32.totalorder %s26, %s29
      %p35 = scmp.eq.s32.totalorder %s16, 0
      %p36 = por %p34, %p35
      %p37 = scmp.ne.s32.totalorder %s26, %s29
      %p38 = scmp.eq.s32.totalorder %s21, 1
      %p39 = por %p37, %p38
      %p40 = scmp.ne.s32.totalorder %s29, %s30
      %p41 = scmp.eq.s32.totalorder %s21, 0
      %p42 = por %p40, %p41
      %p43 = scmp.ne.s32.totalorder %s29, %s30
      %p44 = scmp.eq.s32.totalorder %s22, 1
      %p45 = por %p43, %p44
      %p47 = scmp.ne.s32.totalorder %s30, %s46
      %p48 = scmp.eq.s32.totalorder %s22, 0
      %p49 = por %p47, %p48
      %s51 = sadd.s32 %s50, 1
      %p54 = scmp.eq.s32.totalorder %s16, 1
      %p55 = scmp.ne.s32.totalorder %s50, %s52
      %p56 = scmp.eq.s32.totalorder %s16, 0
      %p57 = por %p55, %p56
      %p58 = scmp.ne.s32.totalorder %s50, %s52
      %p59 = scmp.eq.s32.totalorder %s21, 1
      %p60 = por %p58, %p59
      %p61 = scmp.ne.s32.totalorder %s52, %s53
      %p62 = scmp.eq.s32.totalorder %s21, 0
      %p63 = por %p61, %p62
      %p64 = scmp.ne.s32.totalorder %s52, %s53
      %p65 = scmp.eq.s32.totalorder %s22, 1
      %p66 = por %p64, %p65
      %p68 = scmp.ne.s32.totalorder %s53, %s67
      %p69 = scmp.eq.s32.totalorder %s22, 0
      %p70 = por %p68, %p69
      %s72 = sadd.s32 %s71, 1
      %p75 = scmp.eq.s32.totalorder %s16, 1
      %p76 = scmp.ne.s32.totalorder %s71, %s73
      %p77 = scmp.eq.s32.totalorder %s16, 0
      %p78 = por %p76, %p77
      %p79 = scmp.ne.s32.totalorder %s71, %s73
      %p80 = scmp.eq.s32.totalorder %s21, 1
      %p81 = por %p79, %p80
      %p82 = scmp.ne.s32.totalorder %s73, %s74
      %p83 = scmp.eq.s32.totalorder %s21, 0
      %p84 = por %p82, %p83
      %p85 = scmp.ne.s32.totalorder %s73, %s74
      %p86 = scmp.eq.s32.totalorder %s22, 1
      %p87 = por %p85, %p86
      %p89 = scmp.ne.s32.totalorder %s74, %s88
      %p90 = scmp.eq.s32.totalorder %s22, 0
      %p91 = por %p89, %p90
      %s92 = ssub.s32 %s16, %s23
      %p93 = scmp.eq.s32.totalorder %s92, 0
      %s95 = sadd.s32 %s94, 1
      %s96 = scalar_select %p93, %s94, %s95
      %p99 = pneg %p93
      %p100 = scmp.eq.s32.totalorder %s16, 1
      %p101 = por %p99, %p100
      %p102 = scmp.ne.s32.totalorder %s94, %s97
      %p103 = scmp.eq.s32.totalorder %s16, 0
      %p104 = por %p102, %p103
      %p105 = scmp.ne.s32.totalorder %s94, %s97
      %p106 = scmp.eq.s32.totalorder %s21, 1
      %p107 = por %p105, %p106
      %p108 = scmp.ne.s32.totalorder %s97, %s98
      %p109 = scmp.eq.s32.totalorder %s21, 0
      %p110 = por %p108, %p109
      %p111 = scmp.ne.s32.totalorder %s97, %s98
      %p112 = scmp.eq.s32.totalorder %s22, 1
      %p113 = por %p111, %p112
      %p115 = scmp.ne.s32.totalorder %s98, %s114
      %p116 = scmp.eq.s32.totalorder %s22, 0
      %p117 = por %p115, %p116
      %p118 = scmp.le.s32.totalorder 1, %s16
      %p119 = scmp.lt.s32.totalorder %s16, 3
      %p120 = pnand %p118, %p119
      %p121 = pneg %p120
      // Predicated region
      $region9: #{tpu_custom_call.1} parent=5 // pred_check
        _
      $region10: #{tpu_custom_call.1} parent=5 // pred_check_branch
        %123 = sbr.rel (%p120) target = $region12
      $region11: #{tpu_custom_call.1} parent=5 // pred_region
        %s124 = ssub.s32 %s16, 1
        // Predicated region
        $region13: #{tpu_custom_call.1} parent=11 // pred_check
          %p125 = pneg %p63
        $region14: #{tpu_custom_call.1} parent=11 // pred_check_branch
          %127 = sbr.rel (%p125) target = $region16
        $region15: #{tpu_custom_call.1} parent=11 // pred_region
          %s129 = ssub.s32 64, 64
          %130 = vsyncadd [#allocation6], %s129
          %s132 = sshll.u32 [#allocation5], 4
          %s133 = int_to_ptr.vmem [resolvable:$true] %s132
          %135 = dma.hbm_to_vmem [thread:$0]  %s1, 64, %s133, [#allocation6]
        $region16: #{tpu_custom_call.1} parent=11 // pred_fallthru
          _
        // Predicated region
        $region17: #{tpu_custom_call.1} parent=11 // pred_check
          %p136 = pneg %p84
        $region18: #{tpu_custom_call.1} parent=11 // pred_check_branch
          %138 = sbr.rel (%p136) target = $region20
        $region19: #{tpu_custom_call.1} parent=11 // pred_region
          _
        $region20: #{tpu_custom_call.1} parent=11 // pred_fallthru
          _
      $region12: #{tpu_custom_call.1} parent=5 // pred_fallthru
        _
      %p139 = scmp.lt.s32.totalorder %s16, 2
      // Predicated region
      $region21: #{tpu_custom_call.1} parent=5 // pred_check
        %p140 = pneg %p139
      $region22: #{tpu_custom_call.1} parent=5 // pred_check_branch
        %142 = sbr.rel (%p140) target = $region24
      $region23: #{tpu_custom_call.1} parent=5 // pred_region
        // Predicated region
        $region25: #{tpu_custom_call.1} parent=23 // pred_check
          %p143 = pneg %p36
        $region26: #{tpu_custom_call.1} parent=23 // pred_check_branch
          %145 = sbr.rel (%p143) target = $region28
        $region27: #{tpu_custom_call.1} parent=23 // pred_region
          %s146 = sand.u32 %s26, 1
          %s147 = scalar_lea.sflag [#allocation3], %s146
          %s148 = sand.u32 %s26, 1
          %s149 = smul.addr %s148, 8
          %s150 = scalar_lea.vmem [#allocation2], %s149
          %s152 = ssub.s32 128, 128
          %153 = vsyncadd %s147, %s152
          %s154 = smul.addr %s16, 2
          %s155 = smul.addr %s154, 64
          %s156 = scalar_lea.hbm %s0, %s155
          %s158 = sshll.u32 %s150, 4
          %s159 = int_to_ptr.vmem [resolvable:$true] %s158
          %161 = dma.hbm_to_vmem [thread:$0]  %s156, 128, %s159, %s147
        $region28: #{tpu_custom_call.1} parent=23 // pred_fallthru
          _
      $region24: #{tpu_custom_call.1} parent=5 // pred_fallthru
        _
      %p162 = scmp.le.s32.totalorder 1, %s16
      %p163 = scmp.lt.s32.totalorder %s16, 3
      %p164 = pnand %p162, %p163
      %p165 = pneg %p164
      // Predicated region
      $region29: #{tpu_custom_call.1} parent=5 // pred_check
        _
      $region30: #{tpu_custom_call.1} parent=5 // pred_check_branch
        %167 = sbr.rel (%p164) target = $region32
      $region31: #{tpu_custom_call.1} parent=5 // pred_region
        %s168 = ssub.s32 %s16, 1
        %s169 = sand.u32 %s29, 1
        %s170 = scalar_lea.sflag [#allocation3], %s169
        %s171 = sand.u32 %s29, 1
        %s172 = smul.addr %s171, 8
        %s173 = scalar_lea.vmem [#allocation2], %s172
        // Predicated region
        $region33: #{tpu_custom_call.1} parent=31 // pred_check
          %p174 = pneg %p42
        $region34: #{tpu_custom_call.1} parent=31 // pred_check_branch
          %176 = sbr.rel (%p174) target = $region36
        $region35: #{tpu_custom_call.1} parent=31 // pred_region
          %177 = dma.done %s170, 128
        $region36: #{tpu_custom_call.1} parent=31 // pred_fallthru
          _
        // Predicated region
        $region37: #{tpu_custom_call.1} parent=31 // pred_check
          %p178 = pneg %p63
        $region38: #{tpu_custom_call.1} parent=31 // pred_check_branch
          %180 = sbr.rel (%p178) target = $region40
        $region39: #{tpu_custom_call.1} parent=31 // pred_region
          %181 = dma.done [#allocation6], 64
        $region40: #{tpu_custom_call.1} parent=31 // pred_fallthru
          _
        %s182 = sand.u32 %s29, 1
        %s183 = scalar_lea.sflag [#allocation3], %s182
        %s184 = sand.u32 %s29, 1
        %s185 = smul.addr %s184, 8
        %s186 = scalar_lea.vmem [#allocation2], %s185
        %p187 = pneg %p42
        %p188 = pneg %p39
        %p189 = pneg %p63
        %p190 = pneg %p60
        %p191 = pneg %p84
        %p192 = pneg %p81
        %p193 = pneg %p110
        %p194 = pneg %p107
        %s195 = sand.u32 %s97, 1
        %s196 = scalar_lea.sflag [#allocation4], %s195
        %s197 = sand.u32 %s97, 1
        %s198 = smul.addr %s197, 8
        %s199 = scalar_lea.vmem [#allocation7], %s198
        %v200 = vld [vmem:[%s173] sm:$0xff]
        %v202 = vcombine.high %v200, %v200
        %vm204 = vcmask 1043456
        %v205 = vsel %vm204, %v200, 0.0
        %v206 = vsel %vm204, %v202, 0.0
        %v207 = vadd.f32 %v205, %v206
        %208 = vadd.xlane.f32.xlu0 %v207
        %v209 = vpop.xlane.xlu0 %208
        %v210 = vmul.f32 %v209, 0.00390625
        %v211 = vsel %vm204, %v200, -inf
        %v212 = vsel %vm204, %v202, -inf
        %v213 = vmax.f32 %v211, %v212
        %214 = vmax.xlane.f32.xlu0 %v213
        %v215 = vpop.xlane.xlu0 %214
        %v216 = vld [vmem:[#allocation5] sm:$0xf]
        %v217 = vld [vmem:[%s2] sm:$0xf]
        %vm218 = vcmask 31744
        %v220 = vsel %vm218, %v216, 0
        %v223 = vsel %vm204, %v210, 0
        %225 = vmatprep.subr.mxu0 0.0
        %226 = vmatpush1.msra.mxu0 %v223
        %227 = vmatprep.subr.mxu0 0.0
        %228 = vmatpush1.msra.mxu0 0.0
        %229 = vmatprep.subr.mxu0 0.0
        %230 = vmatpush1.msra.mxu0 0.0
        %231 = vmatprep.subr.mxu0 0.0
        %232 = vmatpush1.msra.mxu0 0.0
        %233 = vmatprep.subr.mxu0 0.0
        %234 = vmatpush1.msra.mxu0 0.0
        %235 = vmatprep.subr.mxu0 0.0
        %236 = vmatpush1.msra.mxu0 0.0
        %237 = vmatprep.subr.mxu0 0.0
        %238 = vmatpush1.msra.mxu0 0.0
        %239 = vmatprep.subr.mxu0 0.0
        %240 = vmatpush1.msra.mxu0 0.0
        %241 = vmatprep.subr.mxu0 0.0
        %242 = vmatpush1.msra.mxu0 0.0
        %243 = vmatprep.subr.mxu0 0.0
        %244 = vmatpush1.msra.mxu0 0.0
        %245 = vmatprep.subr.mxu0 0.0
        %246 = vmatpush1.msra.mxu0 0.0
        %247 = vmatprep.subr.mxu0 0.0
        %248 = vmatpush1.msra.mxu0 0.0
        %249 = vmatprep.subr.mxu0 0.0
        %250 = vmatpush1.msra.mxu0 0.0
        %251 = vmatprep.subr.mxu0 0.0
        %252 = vmatpush1.msra.mxu0 0.0
        %253 = vmatprep.subr.mxu0 0.0
        %254 = vmatpush1.msra.mxu0 0.0
        %255 = vmatprep.subr.mxu0 0.0
        %256 = vmatpush1.msra.mxu0 0.0
        %257 = vmatprep.subr.mxu0 0.0
        %258 = vmatpush1.msra.mxu0 0.0
        %259 = vmatprep.subr.mxu0 0.0
        %260 = vmatpush1.msra.mxu0 0.0
        %261 = vmatprep.subr.mxu0 0.0
        %262 = vmatpush1.msra.mxu0 0.0
        %263 = vmatprep.subr.mxu0 0.0
        %264 = vmatpush1.msra.mxu0 0.0
        %265 = vmatprep.subr.mxu0 0.0
        %266 = vmatpush1.msra.mxu0 0.0
        %267 = vmatprep.subr.mxu0 0.0
        %268 = vmatpush1.msra.mxu0 0.0
        %269 = vmatprep.subr.mxu0 0.0
        %270 = vmatpush1.msra.mxu0 0.0
        %271 = vmatprep.subr.mxu0 0.0
        %272 = vmatpush1.msra.mxu0 0.0
        %273 = vmatprep.subr.mxu0 0.0
        %274 = vmatpush1.msra.mxu0 0.0
        %275 = vmatprep.subr.mxu0 0.0
        %276 = vmatpush1.msra.mxu0 0.0
        %277 = vmatprep.subr.mxu0 0.0
        %278 = vmatpush1.msra.mxu0 0.0
        %279 = vmatprep.subr.mxu0 0.0
        %280 = vmatpush1.msra.mxu0 0.0
        %281 = vmatprep.subr.mxu0 0.0
        %282 = vmatpush1.msra.mxu0 0.0
        %283 = vmatprep.subr.mxu0 0.0
        %284 = vmatpush1.msra.mxu0 0.0
        %285 = vmatprep.subr.mxu0 0.0
        %286 = vmatpush1.msra.mxu0 0.0
        %287 = vmatprep.subr.mxu0 0.0
        %288 = vmatpush1.msra.mxu0 0.0
        %289 = vmatprep.mubr.f32.mxu0 0.0
        %290 = vmatmul.mubr.f32.gmra.mrb[0].mxu0 %v220
        %v291 = vpop.f32.mrb[0].mxu0
        %v292 = vadd.f32 0.0, %v291
        %v293 = vpop.f32.mrb[0].mxu0
        %294 = vdwg.mxu0
        %v295 = vmax.f32 %v292, 0.0
        %v297 = vsel %vm204, %v215, 0
        %299 = vmatprep.subr.mxu0 0.0
        %300 = vmatpush1.msra.mxu0 %v297
        %301 = vmatprep.subr.mxu0 0.0
        %302 = vmatpush1.msra.mxu0 0.0
        %303 = vmatprep.subr.mxu0 0.0
        %304 = vmatpush1.msra.mxu0 0.0
        %305 = vmatprep.subr.mxu0 0.0
        %306 = vmatpush1.msra.mxu0 0.0
        %307 = vmatprep.subr.mxu0 0.0
        %308 = vmatpush1.msra.mxu0 0.0
        %309 = vmatprep.subr.mxu0 0.0
        %310 = vmatpush1.msra.mxu0 0.0
        %311 = vmatprep.subr.mxu0 0.0
        %312 = vmatpush1.msra.mxu0 0.0
        %313 = vmatprep.subr.mxu0 0.0
        %314 = vmatpush1.msra.mxu0 0.0
        %315 = vmatprep.subr.mxu0 0.0
        %316 = vmatpush1.msra.mxu0 0.0
        %317 = vmatprep.subr.mxu0 0.0
        %318 = vmatpush1.msra.mxu0 0.0
        %319 = vmatprep.subr.mxu0 0.0
        %320 = vmatpush1.msra.mxu0 0.0
        %321 = vmatprep.subr.mxu0 0.0
        %322 = vmatpush1.msra.mxu0 0.0
        %323 = vmatprep.subr.mxu0 0.0
        %324 = vmatpush1.msra.mxu0 0.0
        %325 = vmatprep.subr.mxu0 0.0
        %326 = vmatpush1.msra.mxu0 0.0
        %327 = vmatprep.subr.mxu0 0.0
        %328 = vmatpush1.msra.mxu0 0.0
        %329 = vmatprep.subr.mxu0 0.0
        %330 = vmatpush1.msra.mxu0 0.0
        %331 = vmatprep.subr.mxu0 0.0
        %332 = vmatpush1.msra.mxu0 0.0
        %333 = vmatprep.subr.mxu0 0.0
        %334 = vmatpush1.msra.mxu0 0.0
        %335 = vmatprep.subr.mxu0 0.0
        %336 = vmatpush1.msra.mxu0 0.0
        %337 = vmatprep.subr.mxu0 0.0
        %338 = vmatpush1.msra.mxu0 0.0
        %339 = vmatprep.subr.mxu0 0.0
        %340 = vmatpush1.msra.mxu0 0.0
        %341 = vmatprep.subr.mxu0 0.0
        %342 = vmatpush1.msra.mxu0 0.0
        %343 = vmatprep.subr.mxu0 0.0
        %344 = vmatpush1.msra.mxu0 0.0
        %345 = vmatprep.subr.mxu0 0.0
        %346 = vmatpush1.msra.mxu0 0.0
        %347 = vmatprep.subr.mxu0 0.0
        %348 = vmatpush1.msra.mxu0 0.0
        %349 = vmatprep.subr.mxu0 0.0
        %350 = vmatpush1.msra.mxu0 0.0
        %351 = vmatprep.subr.mxu0 0.0
        %352 = vmatpush1.msra.mxu0 0.0
        %353 = vmatprep.subr.mxu0 0.0
        %354 = vmatpush1.msra.mxu0 0.0
        %355 = vmatprep.subr.mxu0 0.0
        %356 = vmatpush1.msra.mxu0 0.0
        %357 = vmatprep.subr.mxu0 0.0
        %358 = vmatpush1.msra.mxu0 0.0
        %359 = vmatprep.subr.mxu0 0.0
        %360 = vmatpush1.msra.mxu0 0.0
        %361 = vmatprep.subr.mxu0 0.0
        %362 = vmatpush1.msra.mxu0 0.0
        %363 = vmatprep.mubr.f32.mxu0 0.0
        %364 = vmatmul.mubr.f32.gmra.mrb[0].mxu0 %v220
        %v365 = vpop.f32.mrb[0].mxu0
        %v366 = vadd.f32 0.0, %v365
        %v367 = vpop.f32.mrb[0].mxu0
        %368 = vdwg.mxu0
        %v369 = vmax.f32 %v366, 0.0
        %v370 = vadd.f32 %v295, %v369
        %v372 = vsel %vm218, %v217, 0
        %v375 = vsel %vm204, %v370, 0
        %377 = vmatprep.subr.mxu0 0.0
        %378 = vmatpush1.msra.mxu0 %v375
        %379 = vmatprep.subr.mxu0 0.0
        %380 = vmatpush1.msra.mxu0 0.0
        %381 = vmatprep.subr.mxu0 0.0
        %382 = vmatpush1.msra.mxu0 0.0
        %383 = vmatprep.subr.mxu0 0.0
        %384 = vmatpush1.msra.mxu0 0.0
        %385 = vmatprep.subr.mxu0 0.0
        %386 = vmatpush1.msra.mxu0 0.0
        %387 = vmatprep.subr.mxu0 0.0
        %388 = vmatpush1.msra.mxu0 0.0
        %389 = vmatprep.subr.mxu0 0.0
        %390 = vmatpush1.msra.mxu0 0.0
        %391 = vmatprep.subr.mxu0 0.0
        %392 = vmatpush1.msra.mxu0 0.0
        %393 = vmatprep.subr.mxu0 0.0
        %394 = vmatpush1.msra.mxu0 0.0
        %395 = vmatprep.subr.mxu0 0.0
        %396 = vmatpush1.msra.mxu0 0.0
        %397 = vmatprep.subr.mxu0 0.0
        %398 = vmatpush1.msra.mxu0 0.0
        %399 = vmatprep.subr.mxu0 0.0
        %400 = vmatpush1.msra.mxu0 0.0
        %401 = vmatprep.subr.mxu0 0.0
        %402 = vmatpush1.msra.mxu0 0.0
        %403 = vmatprep.subr.mxu0 0.0
        %404 = vmatpush1.msra.mxu0 0.0
        %405 = vmatprep.subr.mxu0 0.0
        %406 = vmatpush1.msra.mxu0 0.0
        %407 = vmatprep.subr.mxu0 0.0
        %408 = vmatpush1.msra.mxu0 0.0
        %409 = vmatprep.subr.mxu0 0.0
        %410 = vmatpush1.msra.mxu0 0.0
        %411 = vmatprep.subr.mxu0 0.0
        %412 = vmatpush1.msra.mxu0 0.0
        %413 = vmatprep.subr.mxu0 0.0
        %414 = vmatpush1.msra.mxu0 0.0
        %415 = vmatprep.subr.mxu0 0.0
        %416 = vmatpush1.msra.mxu0 0.0
        %417 = vmatprep.subr.mxu0 0.0
        %418 = vmatpush1.msra.mxu0 0.0
        %419 = vmatprep.subr.mxu0 0.0
        %420 = vmatpush1.msra.mxu0 0.0
        %421 = vmatprep.subr.mxu0 0.0
        %422 = vmatpush1.msra.mxu0 0.0
        %423 = vmatprep.subr.mxu0 0.0
        %424 = vmatpush1.msra.mxu0 0.0
        %425 = vmatprep.subr.mxu0 0.0
        %426 = vmatpush1.msra.mxu0 0.0
        %427 = vmatprep.subr.mxu0 0.0
        %428 = vmatpush1.msra.mxu0 0.0
        %429 = vmatprep.subr.mxu0 0.0
        %430 = vmatpush1.msra.mxu0 0.0
        %431 = vmatprep.subr.mxu0 0.0
        %432 = vmatpush1.msra.mxu0 0.0
        %433 = vmatprep.subr.mxu0 0.0
        %434 = vmatpush1.msra.mxu0 0.0
        %435 = vmatprep.subr.mxu0 0.0
        %436 = vmatpush1.msra.mxu0 0.0
        %437 = vmatprep.subr.mxu0 0.0
        %438 = vmatpush1.msra.mxu0 0.0
        %439 = vmatprep.subr.mxu0 0.0
        %440 = vmatpush1.msra.mxu0 0.0
        %441 = vmatprep.mubr.f32.mxu0 0.0
        %442 = vmatmul.mubr.f32.gmra.mrb[0].mxu0 %v372
        %v443 = vpop.f32.mrb[0].mxu0
        %v444 = vadd.f32 0.0, %v443
        %v445 = vpop.f32.mrb[0].mxu0
        %446 = vdwg.mxu0
        %v447 = vxor.u32 %v444, 2147483648
        %v448 = vmul.f32 %v447, 1.442695
        %v449 = vpow.pop %v448
        %v450 = vadd.f32 %v449, 1.0
        %v451 = vrcp.pop %v450
        %v452 = vmul.f32 1.0, %v451
        %454 = vset.pattern.permute.xlu0 0
        %455 = vperm.xlu0 %454, %v452
        %v456 = vpop.permute.xlu0 %455
        %v458 = vunpack.c.l.s4 839922192
        %v459 = vunpack.c.0.s8 %v458
        %v460 = vlaneseq
        %v461 = vshrl.u32 %v460, 7
        %v462 = vsub.s32 %v459, %v461
        %v463 = vrot.slane %v456, %v462
        %v465 = vmul.f32 %v200, %v463
        %466 = vst [vmem:[%s199] sm:$0xff] %v465
        %s467 = sand.u32 %s97, 1
        %s468 = scalar_lea.sflag [#allocation4], %s467
        %s469 = sand.u32 %s97, 1
        %s470 = smul.addr %s469, 8
        %s471 = scalar_lea.vmem [#allocation7], %s470
        // Predicated region
        $region41: #{tpu_custom_call.1} parent=31 // pred_check
          %p472 = pneg %p107
        $region42: #{tpu_custom_call.1} parent=31 // pred_check_branch
          %474 = sbr.rel (%p472) target = $region44
        $region43: #{tpu_custom_call.1} parent=31 // pred_region
          %s476 = ssub.s32 128, 128
          %477 = vsyncadd %s468, %s476
          %s478 = smul.addr %s21, 2
          %s479 = smul.addr %s478, 64
          %s480 = scalar_lea.hbm %s3, %s479
          %s482 = sshll.u32 %s471, 4
          %s483 = int_to_ptr.vmem [resolvable:$true] %s482
          %485 = dma.vmem_to_hbm [thread:$0]  %s483, 128, %s480, %s468
        $region44: #{tpu_custom_call.1} parent=31 // pred_fallthru
          _
      $region32: #{tpu_custom_call.1} parent=5 // pred_fallthru
        _
      %p486 = scmp.le.s32.totalorder 2, %s16
      // Predicated region
      $region45: #{tpu_custom_call.1} parent=5 // pred_check
        %p487 = pneg %p486
      $region46: #{tpu_custom_call.1} parent=5 // pred_check_branch
        %489 = sbr.rel (%p487) target = $region48
      $region47: #{tpu_custom_call.1} parent=5 // pred_region
        %s490 = ssub.s32 %s16, 2
        // Predicated region
        $region49: #{tpu_custom_call.1} parent=47 // pred_check
          %p491 = pneg %p113
        $region50: #{tpu_custom_call.1} parent=47 // pred_check_branch
          %493 = sbr.rel (%p491) target = $region52
        $region51: #{tpu_custom_call.1} parent=47 // pred_region
          %s494 = sand.u32 %s98, 1
          %s495 = scalar_lea.sflag [#allocation4], %s494
          %s496 = sand.u32 %s98, 1
          %s497 = smul.addr %s496, 8
          %s498 = scalar_lea.vmem [#allocation7], %s497
          %499 = dma.done %s495, 128
        $region52: #{tpu_custom_call.1} parent=47 // pred_fallthru
          _
      $region48: #{tpu_custom_call.1} parent=5 // pred_fallthru
        _
    $region6: #{tpu_custom_call.1} parent=1 // loop_footer
      %s20 = sadd.s32 1, %s16
    $region7: #{tpu_custom_call.1} parent=1 // loop_footer_branch
      %15 = sbr.rel target = $region3
    $region8: #{tpu_custom_call.1} parent=1 // loop_exit
      _
    %500 = vsyncpa [#allocation3], 1
    %s501 = scalar_lea.sflag [#allocation3], 1
    %502 = vsyncpa %s501, 1
    %503 = vsyncpa [#allocation6], 1
    %504 = vsyncpa [#allocation4], 1
    %s505 = scalar_lea.sflag [#allocation4], 1
    %506 = vsyncpa %s505, 1

</llo_original>
